<compile_context>
chip_gen: v6e
topology: v6e:2x2x1
jax: 0.10.0
libtpu: 0.0.40
codegen_flags: <defaults>
</compile_context>

<pallas_src>
import jax
import jax.numpy as jnp
from jax.experimental import pallas as pl
from jax.experimental.pallas import tpu as pltpu


IN_FEATURES = 256
H1, H2, H3 = 512, 256, 128
OUT_FEATURES = 10
OUT_PAD = 128  # lane-dense padded final width (multiple of 128)


def mlp_kernel(x_ref, w1_ref, b1_ref, w2_ref, b2_ref, w3_ref, b3_ref,
               w4_ref, b4_ref, o_ref):
    """Fused 4-layer MLP on one (TB, 256) batch tile.

    Matmuls run with bf16 operands (MXU-native on v5e/v6e/v7x) and f32
    accumulation.  Bias-add happens in f32 (the accumulator dtype), then the
    activation is cast to bf16 and ReLU'd in bf16 to keep the VPU epilogue
    cheap.  Weights/biases use constant index_maps so they stay VMEM-resident
    across all grid steps.
    """
    # Loop-invariant f32 bias loads, hoisted to the top of the body.
    b1 = b1_ref[...]
    b2 = b2_ref[...]
    b3 = b3_ref[...]
    b4 = b4_ref[...]

    # In-kernel f32 -> bf16 cast (input arrives as f32, no wrapper-side pass).
    x = x_ref[...].astype(jnp.bfloat16)  # (TB, 256)

    h = jnp.dot(x, w1_ref[...], preferred_element_type=jnp.float32) + b1
    h = jnp.maximum(h.astype(jnp.bfloat16), 0.0)
    # TODO(synk): training-mode dropout (rate=0.5) would use pltpu.prng_seed +
    # pltpu.prng_random_bits; eval-mode dropout is identity (implemented here).

    h = jnp.dot(h, w2_ref[...], preferred_element_type=jnp.float32) + b2
    h = jnp.maximum(h.astype(jnp.bfloat16), 0.0)

    h = jnp.dot(h, w3_ref[...], preferred_element_type=jnp.float32) + b3
    h = jnp.maximum(h.astype(jnp.bfloat16), 0.0)

    out = jnp.dot(h, w4_ref[...], preferred_element_type=jnp.float32) + b4
    o_ref[...] = out.astype(o_ref.dtype)  # (TB, 128) bf16: lane-dense store


def _choose_batch_tile(b):
    # 512 rows keep every grid step well above the per-step pipeline overhead
    # while staying inside v5e's 16 MiB scoped-VMEM default.
    if b >= 512:
        return 512
    # Small batches: round up to a multiple of 16 so bf16 vregs stay dense.
    return max(16, ((b + 15) // 16) * 16)


@jax.jit
def fully_connected_nn(x, params):
    """x: [B, 1, 16, 16] (NCHW) float32.  Returns logits [B, 10] float32."""
    b = x.shape[0]
    x_flat = x.reshape(b, -1)  # nn.Flatten(): [B, 256] f32 (cast happens in-kernel)
    assert x_flat.shape[1] == IN_FEATURES, "FullyConnectedNN expects 256 features"

    (w1, b1), (w2, b2), (w3, b3), (w4, b4) = params

    tb = _choose_batch_tile(b)
    b_pad = ((b + tb - 1) // tb) * tb
    if b_pad != b:
        x_flat = jnp.pad(x_flat, ((0, b_pad - b), (0, 0)))
    grid = (b_pad // tb,)

    const = lambda i: (0, 0)  # weights/biases resident across the batch grid

    flops = 2 * b_pad * (IN_FEATURES * H1 + H1 * H2 + H2 * H3 + H3 * OUT_PAD)
    bytes_accessed = (
        b_pad * IN_FEATURES * 4                                   # x (f32)
        + sum(int(p.size) * p.dtype.itemsize for pair in params for p in pair)
        + b_pad * OUT_PAD * 2)                                    # out (bf16)

    out = pl.pallas_call(
        mlp_kernel,
        out_shape=jax.ShapeDtypeStruct((b_pad, OUT_PAD), jnp.bfloat16),
        grid=grid,
        in_specs=[
            pl.BlockSpec((tb, IN_FEATURES), lambda i: (i, 0)),   # x batch tile
            pl.BlockSpec((IN_FEATURES, H1), const),              # w1
            pl.BlockSpec((1, H1), const),                        # b1
            pl.BlockSpec((H1, H2), const),                       # w2
            pl.BlockSpec((1, H2), const),                        # b2
            pl.BlockSpec((H2, H3), const),                       # w3
            pl.BlockSpec((1, H3), const),                        # b3
            pl.BlockSpec((H3, OUT_PAD), const),                  # w4 (padded)
            pl.BlockSpec((1, OUT_PAD), const),                   # b4 (padded)
        ],
        out_specs=pl.BlockSpec((tb, OUT_PAD), lambda i: (i, 0)),
        compiler_params=pltpu.CompilerParams(
            dimension_semantics=("parallel",)),
        cost_estimate=pl.CostEstimate(
            flops=flops, transcendentals=0, bytes_accessed=bytes_accessed),
    )(x_flat, w1, b1, w2, b2, w3, b3, w4, b4)

    return out[:b, :OUT_FEATURES].astype(jnp.float32)


def init_params(key):
    """Deterministic init mimicking PyTorch's nn.Linear default:
    U(-1/sqrt(fan_in), 1/sqrt(fan_in)) for both weight and bias.
    Weights stored as [in, out] bf16 (MXU-native); biases as [1, out] f32.
    The final layer is zero-padded to a lane-dense width of 128."""
    dims = [(IN_FEATURES, H1), (H1, H2), (H2, H3), (H3, OUT_FEATURES)]
    params = []
    for fan_in, fan_out in dims:
        key, kw, kb = jax.random.split(key, 3)
        bound = 1.0 / (fan_in ** 0.5)
        w = jax.random.uniform(kw, (fan_in, fan_out), jnp.float32, -bound, bound)
        bias = jax.random.uniform(kb, (1, fan_out), jnp.float32, -bound, bound)
        if fan_out == OUT_FEATURES:
            pad = OUT_PAD - OUT_FEATURES
            w = jnp.pad(w, ((0, 0), (0, pad)))
            bias = jnp.pad(bias, ((0, 0), (0, pad)))
        params.append((w.astype(jnp.bfloat16), bias))
    return params


def reference_forward(x, params):
    """Pure-JAX reference mirroring the kernel's bf16/f32 numerics."""
    (w1, b1), (w2, b2), (w3, b3), (w4, b4) = params
    h = x.reshape(x.shape[0], -1).astype(jnp.bfloat16)
    h = jnp.maximum(
        (jnp.dot(h, w1, preferred_element_type=jnp.float32) + b1
         ).astype(jnp.bfloat16), 0.0)
    h = jnp.maximum(
        (jnp.dot(h, w2, preferred_element_type=jnp.float32) + b2
         ).astype(jnp.bfloat16), 0.0)
    h = jnp.maximum(
        (jnp.dot(h, w3, preferred_element_type=jnp.float32) + b3
         ).astype(jnp.bfloat16), 0.0)
    out = jnp.dot(h, w4, preferred_element_type=jnp.float32) + b4
    return out[:, :OUT_FEATURES].astype(jnp.float32)


if __name__ == "__main__":
    key = jax.random.PRNGKey(0)
    key, kx1, kx2, kp = jax.random.split(key, 4)
    params = init_params(kp)

    # Small deterministic input: batch=2, NCHW [2, 1, 16, 16] -> 256 features.
    x_small = jax.random.normal(kx1, (2, 1, 16, 16), jnp.float32)
    out_small = jax.block_until_ready(fully_connected_nn(x_small, params))
    ref_small = reference_forward(x_small, params)
    assert out_small.shape == (2, 10), out_small.shape
    assert jnp.allclose(out_small, ref_small, atol=2e-2, rtol=2e-2), \
        "small-batch mismatch vs reference"

    # Larger batch: exercises the batch grid (TB=512, 2 steps) + pad/slice path.
    x_big = jax.random.normal(kx2, (600, 1, 16, 16), jnp.float32)
    out_big = jax.block_until_ready(fully_connected_nn(x_big, params))
    ref_big = reference_forward(x_big, params)
    assert out_big.shape == (600, 10), out_big.shape
    assert jnp.allclose(out_big, ref_big, atol=2e-2, rtol=2e-2), \
        "large-batch mismatch vs reference"

    print("KERNEL_OK")
</pallas_src>

<mosaic_0001>
module attributes {stable_mosaic.version = 11 : i64} {
  func.func @mlp_kernel(%arg0: i32, %arg1: memref<16x256xf32, #tpu.memory_space<vmem>>, %arg2: memref<256x512xbf16, #tpu.memory_space<vmem>>, %arg3: memref<1x512xf32, #tpu.memory_space<vmem>>, %arg4: memref<512x256xbf16, #tpu.memory_space<vmem>>, %arg5: memref<1x256xf32, #tpu.memory_space<vmem>>, %arg6: memref<256x128xbf16, #tpu.memory_space<vmem>>, %arg7: memref<1x128xf32, #tpu.memory_space<vmem>>, %arg8: memref<128x128xbf16, #tpu.memory_space<vmem>>, %arg9: memref<1x128xf32, #tpu.memory_space<vmem>>, %arg10: memref<16x128xbf16, #tpu.memory_space<vmem>>) attributes {dimension_semantics = [#tpu.dimension_semantics<parallel>], iteration_bounds = array<i64: 1>, scalar_prefetch = 0 : i64, scratch_operands = 0 : i64, tpu.core_type = #tpu.core_type<tc>, window_params = [{transform_indices = @transform_0, window_bounds = array<i64: 16, 256>}, {pipeline_mode = #tpu.pipeline_mode<synchronous>, transform_indices = @transform_1, window_bounds = array<i64: 256, 512>}, {pipeline_mode = #tpu.pipeline_mode<synchronous>, transform_indices = @transform_2, window_bounds = array<i64: 1, 512>}, {pipeline_mode = #tpu.pipeline_mode<synchronous>, transform_indices = @transform_3, window_bounds = array<i64: 512, 256>}, {pipeline_mode = #tpu.pipeline_mode<synchronous>, transform_indices = @transform_4, window_bounds = array<i64: 1, 256>}, {pipeline_mode = #tpu.pipeline_mode<synchronous>, transform_indices = @transform_5, window_bounds = array<i64: 256, 128>}, {pipeline_mode = #tpu.pipeline_mode<synchronous>, transform_indices = @transform_6, window_bounds = array<i64: 1, 128>}, {pipeline_mode = #tpu.pipeline_mode<synchronous>, transform_indices = @transform_7, window_bounds = array<i64: 128, 128>}, {pipeline_mode = #tpu.pipeline_mode<synchronous>, transform_indices = @transform_8, window_bounds = array<i64: 1, 128>}, {transform_indices = @transform_9, window_bounds = array<i64: 16, 128>}]} {
    %c0 = arith.constant 0 : index
    %c0_0 = arith.constant 0 : index
    %0 = vector.load %arg3[%c0, %c0_0] : memref<1x512xf32, #tpu.memory_space<vmem>>, vector<1x512xf32>
    %c0_1 = arith.constant 0 : index
    %c0_2 = arith.constant 0 : index
    %1 = vector.load %arg5[%c0_1, %c0_2] : memref<1x256xf32, #tpu.memory_space<vmem>>, vector<1x256xf32>
    %c0_3 = arith.constant 0 : index
    %c0_4 = arith.constant 0 : index
    %2 = vector.load %arg7[%c0_3, %c0_4] : memref<1x128xf32, #tpu.memory_space<vmem>>, vector<1x128xf32>
    %c0_5 = arith.constant 0 : index
    %c0_6 = arith.constant 0 : index
    %3 = vector.load %arg9[%c0_5, %c0_6] : memref<1x128xf32, #tpu.memory_space<vmem>>, vector<1x128xf32>
    %c0_7 = arith.constant 0 : index
    %c0_8 = arith.constant 0 : index
    %4 = vector.load %arg1[%c0_7, %c0_8] : memref<16x256xf32, #tpu.memory_space<vmem>>, vector<16x256xf32>
    %5 = arith.truncf %4 : vector<16x256xf32> to vector<16x256xbf16>
    %c0_9 = arith.constant 0 : index
    %c0_10 = arith.constant 0 : index
    %6 = vector.load %arg2[%c0_9, %c0_10] : memref<256x512xbf16, #tpu.memory_space<vmem>>, vector<256x512xbf16>
    %cst = arith.constant dense<0.000000e+00> : vector<16x512xf32>
    %7 = tpu.matmul %5, %6, %cst {dimension_numbers = #tpu.dot_dimension_numbers<[1], [0], [0], [1], [0, 0, 1, 1], [], []>} : vector<16x256xbf16>, vector<256x512xbf16>, vector<16x512xf32> -> vector<16x512xf32>
    %8 = vector.broadcast %0 : vector<1x512xf32> to vector<16x512xf32>
    %9 = arith.addf %7, %8 : vector<16x512xf32>
    %10 = arith.truncf %9 : vector<16x512xf32> to vector<16x512xbf16>
    %cst_11 = arith.constant 0.000000e+00 : bf16
    %11 = vector.broadcast %cst_11 : bf16 to vector<16x512xbf16>
    %12 = arith.maximumf %10, %11 : vector<16x512xbf16>
    %c0_12 = arith.constant 0 : index
    %c0_13 = arith.constant 0 : index
    %13 = vector.load %arg4[%c0_12, %c0_13] : memref<512x256xbf16, #tpu.memory_space<vmem>>, vector<512x256xbf16>
    %cst_14 = arith.constant dense<0.000000e+00> : vector<16x256xf32>
    %14 = tpu.matmul %12, %13, %cst_14 {dimension_numbers = #tpu.dot_dimension_numbers<[1], [0], [0], [1], [0, 0, 1, 1], [], []>} : vector<16x512xbf16>, vector<512x256xbf16>, vector<16x256xf32> -> vector<16x256xf32>
    %15 = vector.broadcast %1 : vector<1x256xf32> to vector<16x256xf32>
    %16 = arith.addf %14, %15 : vector<16x256xf32>
    %17 = arith.truncf %16 : vector<16x256xf32> to vector<16x256xbf16>
    %cst_15 = arith.constant 0.000000e+00 : bf16
    %18 = vector.broadcast %cst_15 : bf16 to vector<16x256xbf16>
    %19 = arith.maximumf %17, %18 : vector<16x256xbf16>
    %c0_16 = arith.constant 0 : index
    %c0_17 = arith.constant 0 : index
    %20 = vector.load %arg6[%c0_16, %c0_17] : memref<256x128xbf16, #tpu.memory_space<vmem>>, vector<256x128xbf16>
    %cst_18 = arith.constant dense<0.000000e+00> : vector<16x128xf32>
    %21 = tpu.matmul %19, %20, %cst_18 {dimension_numbers = #tpu.dot_dimension_numbers<[1], [0], [0], [1], [0, 0, 1, 1], [], []>} : vector<16x256xbf16>, vector<256x128xbf16>, vector<16x128xf32> -> vector<16x128xf32>
    %22 = vector.broadcast %2 : vector<1x128xf32> to vector<16x128xf32>
    %23 = arith.addf %21, %22 : vector<16x128xf32>
    %24 = arith.truncf %23 : vector<16x128xf32> to vector<16x128xbf16>
    %cst_19 = arith.constant 0.000000e+00 : bf16
    %25 = vector.broadcast %cst_19 : bf16 to vector<16x128xbf16>
    %26 = arith.maximumf %24, %25 : vector<16x128xbf16>
    %c0_20 = arith.constant 0 : index
    %c0_21 = arith.constant 0 : index
    %27 = vector.load %arg8[%c0_20, %c0_21] : memref<128x128xbf16, #tpu.memory_space<vmem>>, vector<128x128xbf16>
    %cst_22 = arith.constant dense<0.000000e+00> : vector<16x128xf32>
    %28 = tpu.matmul %26, %27, %cst_22 {dimension_numbers = #tpu.dot_dimension_numbers<[1], [0], [0], [1], [0, 0, 1, 1], [], []>} : vector<16x128xbf16>, vector<128x128xbf16>, vector<16x128xf32> -> vector<16x128xf32>
    %29 = vector.broadcast %3 : vector<1x128xf32> to vector<16x128xf32>
    %30 = arith.addf %28, %29 : vector<16x128xf32>
    %31 = arith.truncf %30 : vector<16x128xf32> to vector<16x128xbf16>
    %c0_23 = arith.constant 0 : index
    %c0_24 = arith.constant 0 : index
    %32 = vector.load %arg10[%c0_23, %c0_24] : memref<16x128xbf16, #tpu.memory_space<vmem>>, vector<16x128xbf16>
    tpu.vector_store %arg10[%c0_23, %c0_24], %31 {strides = array<i32>} : memref<16x128xbf16, #tpu.memory_space<vmem>>, vector<16x128xbf16>,
    return
  }
  func.func @transform_0(%arg0: i32) -> (i32, i32) {
    %c0_i32 = arith.constant 0 : i32
    %c0_i32_0 = arith.constant 0 : i32
    return %arg0, %c0_i32 : i32, i32
  }
  func.func @transform_1(%arg0: i32) -> (i32, i32) {
    %c0_i32 = arith.constant 0 : i32
    %c0_i32_0 = arith.constant 0 : i32
    %c0_i32_1 = arith.constant 0 : i32
    return %c0_i32, %c0_i32_0 : i32, i32
  }
  func.func @transform_2(%arg0: i32) -> (i32, i32) {
    %c0_i32 = arith.constant 0 : i32
    %c0_i32_0 = arith.constant 0 : i32
    %c0_i32_1 = arith.constant 0 : i32
    return %c0_i32, %c0_i32_0 : i32, i32
  }
  func.func @transform_3(%arg0: i32) -> (i32, i32) {
    %c0_i32 = arith.constant 0 : i32
    %c0_i32_0 = arith.constant 0 : i32
    %c0_i32_1 = arith.constant 0 : i32
    return %c0_i32, %c0_i32_0 : i32, i32
  }
  func.func @transform_4(%arg0: i32) -> (i32, i32) {
    %c0_i32 = arith.constant 0 : i32
    %c0_i32_0 = arith.constant 0 : i32
    %c0_i32_1 = arith.constant 0 : i32
    return %c0_i32, %c0_i32_0 : i32, i32
  }
  func.func @transform_5(%arg0: i32) -> (i32, i32) {
    %c0_i32 = arith.constant 0 : i32
    %c0_i32_0 = arith.constant 0 : i32
    %c0_i32_1 = arith.constant 0 : i32
    return %c0_i32, %c0_i32_0 : i32, i32
  }
  func.func @transform_6(%arg0: i32) -> (i32, i32) {
    %c0_i32 = arith.constant 0 : i32
    %c0_i32_0 = arith.constant 0 : i32
    %c0_i32_1 = arith.constant 0 : i32
    return %c0_i32, %c0_i32_0 : i32, i32
  }
  func.func @transform_7(%arg0: i32) -> (i32, i32) {
    %c0_i32 = arith.constant 0 : i32
    %c0_i32_0 = arith.constant 0 : i32
    %c0_i32_1 = arith.constant 0 : i32
    return %c0_i32, %c0_i32_0 : i32, i32
  }
  func.func @transform_8(%arg0: i32) -> (i32, i32) {
    %c0_i32 = arith.constant 0 : i32
    %c0_i32_0 = arith.constant 0 : i32
    %c0_i32_1 = arith.constant 0 : i32
    return %c0_i32, %c0_i32_0 : i32, i32
  }
  func.func @transform_9(%arg0: i32) -> (i32, i32) {
    %c0_i32 = arith.constant 0 : i32
    %c0_i32_0 = arith.constant 0 : i32
    return %arg0, %c0_i32 : i32, i32
  }
}

</mosaic_0001>

<llo_original>
// kernel: fully_connected_nn.1
$region0: #{fully_connected_nn.1}
  #allocation0 [shape = 'u32[]', space=smem, size = 0x4, offset = 0x4, fixed_abs, tag = 'smem constant byte address 0x4 - core index']
  #allocation1 [shape = 'u32[144,128]{1,0:T(1,128)}', space=vmem, size = 0x12000, scoped, tag = 'internal scratch']
  %s0 = inlined_call_operand.vmem [shape: f32[16,256], index: 0, kind: input, shape index: {}]
  %s1 = inlined_call_operand.hbm [shape: bf16[256,512], index: 1, kind: input, shape index: {}]
  %s2 = inlined_call_operand.vmem [shape: f32[1,512], index: 2, kind: input, shape index: {}]
  %s3 = inlined_call_operand.hbm [shape: bf16[512,256], index: 3, kind: input, shape index: {}]
  %s4 = inlined_call_operand.vmem [shape: f32[1,256], index: 4, kind: input, shape index: {}]
  %s5 = inlined_call_operand.hbm [shape: bf16[256,128], index: 5, kind: input, shape index: {}]
  %s6 = inlined_call_operand.vmem [shape: f32[1,128], index: 6, kind: input, shape index: {}]
  %s7 = inlined_call_operand.vmem [shape: bf16[128,128], index: 7, kind: input, shape index: {}]
  %s8 = inlined_call_operand.vmem [shape: f32[1,128], index: 8, kind: input, shape index: {}]
  %s9 = inlined_call_operand.vmem [shape: bf16[16,128], index: 9, kind: output, shape index: {}]
  %s10 = sld [smem:[#allocation0]]
  $region58: #{fully_connected_nn.1} parent=0
    _
  %s12 = ssub.s32 1, %s10
  %s13 = scalar_select 0, %s12, %s10
  $region1: #{fully_connected_nn.1} parent=0
    #allocation2 [shape = 'u8[262144]{0}', space=vmem, size = 0x40000, scoped, tag = 'input window, operand 1, single buffered']
    #allocation3 [shape = 's32[1]{0}', space=sflag, size = 0x4, scoped, tag = 'scoped memory for fully_connected_nn.1']
    #allocation4 [shape = 'u8[262144]{0}', space=vmem, size = 0x40000, scoped, tag = 'input window, operand 3, single buffered']
    #allocation5 [shape = 's32[1]{0}', space=sflag, size = 0x4, scoped, tag = 'scoped memory for fully_connected_nn.1']
    #allocation6 [shape = 'u8[65536]{0}', space=vmem, size = 0x10000, scoped, tag = 'input window, operand 5, single buffered']
    %14 = vsyncpa [#allocation3], 0
    %15 = vsyncpa [#allocation5], 0
    // Predicated region
    $region2: #{fully_connected_nn.1} parent=1 // pred_check
      _
    $region3: #{fully_connected_nn.1} parent=1 // pred_check_branch
      %17 = sbr.rel (0) target = $region5
    $region4: #{fully_connected_nn.1} parent=1 // pred_region
      _
    $region5: #{fully_connected_nn.1} parent=1 // pred_fallthru
      _
    // Predicated region
    $region6: #{fully_connected_nn.1} parent=1 // pred_check
      _
    $region7: #{fully_connected_nn.1} parent=1 // pred_check_branch
      %19 = sbr.rel (0) target = $region9
    $region8: #{fully_connected_nn.1} parent=1 // pred_region
      %s21 = ssub.s32 8192, 8192
      %22 = vsyncadd [#allocation3], %s21
      %s23 = sshll.u32 [#allocation2], 4
      %s24 = int_to_ptr.vmem [resolvable:$true] %s23
      %29 = dma.hbm_to_vmem [thread:$0]  %s1, 8192, %s24, [#allocation3], 256, 256, 16
    $region9: #{fully_connected_nn.1} parent=1 // pred_fallthru
      _
    // Predicated region
    $region10: #{fully_connected_nn.1} parent=1 // pred_check
      _
    $region11: #{fully_connected_nn.1} parent=1 // pred_check_branch
      %31 = sbr.rel (0) target = $region13
    $region12: #{fully_connected_nn.1} parent=1 // pred_region
      _
    $region13: #{fully_connected_nn.1} parent=1 // pred_fallthru
      _
    // Predicated region
    $region14: #{fully_connected_nn.1} parent=1 // pred_check
      _
    $region15: #{fully_connected_nn.1} parent=1 // pred_check_branch
      %33 = sbr.rel (0) target = $region17
    $region16: #{fully_connected_nn.1} parent=1 // pred_region
      %s35 = ssub.s32 8192, 8192
      %36 = vsyncadd [#allocation5], %s35
      %s37 = sshll.u32 [#allocation4], 4
      %s38 = int_to_ptr.vmem [resolvable:$true] %s37
      %43 = dma.hbm_to_vmem [thread:$0]  %s3, 8192, %s38, [#allocation5], 128, 128, 8
    $region17: #{fully_connected_nn.1} parent=1 // pred_fallthru
      _
    // Predicated region
    $region18: #{fully_connected_nn.1} parent=1 // pred_check
      _
    $region19: #{fully_connected_nn.1} parent=1 // pred_check_branch
      %45 = sbr.rel (0) target = $region21
    $region20: #{fully_connected_nn.1} parent=1 // pred_region
      _
    $region21: #{fully_connected_nn.1} parent=1 // pred_fallthru
      _
    // Predicated region
    $region22: #{fully_connected_nn.1} parent=1 // pred_check
      _
    $region23: #{fully_connected_nn.1} parent=1 // pred_check_branch
      %47 = sbr.rel (0) target = $region25
    $region24: #{fully_connected_nn.1} parent=1 // pred_region
      %s49 = ssub.s32 2048, 2048
      %50 = vsyncadd [#allocation5], %s49
      %s51 = sshll.u32 [#allocation6], 4
      %s52 = int_to_ptr.vmem [resolvable:$true] %s51
      %57 = dma.hbm_to_vmem [thread:$0]  %s5, 2048, %s52, [#allocation5], 64, 64, 4
    $region25: #{fully_connected_nn.1} parent=1 // pred_fallthru
      _
    // Predicated region
    $region26: #{fully_connected_nn.1} parent=1 // pred_check
      _
    $region27: #{fully_connected_nn.1} parent=1 // pred_check_branch
      %59 = sbr.rel (0) target = $region29
    $region28: #{fully_connected_nn.1} parent=1 // pred_region
      _
    $region29: #{fully_connected_nn.1} parent=1 // pred_fallthru
      _
    // Predicated region
    $region30: #{fully_connected_nn.1} parent=1 // pred_check
      _
    $region31: #{fully_connected_nn.1} parent=1 // pred_check_branch
      %61 = sbr.rel (0) target = $region33
    $region32: #{fully_connected_nn.1} parent=1 // pred_region
      _
    $region33: #{fully_connected_nn.1} parent=1 // pred_fallthru
      _
    // Predicated region
    $region34: #{fully_connected_nn.1} parent=1 // pred_check
      _
    $region35: #{fully_connected_nn.1} parent=1 // pred_check_branch
      %63 = sbr.rel (0) target = $region37
    $region36: #{fully_connected_nn.1} parent=1 // pred_region
      _
    $region37: #{fully_connected_nn.1} parent=1 // pred_fallthru
      _
    // Predicated region
    $region38: #{fully_connected_nn.1} parent=1 // pred_check
      _
    $region39: #{fully_connected_nn.1} parent=1 // pred_check_branch
      %65 = sbr.rel (0) target = $region41
    $region40: #{fully_connected_nn.1} parent=1 // pred_region
      %66 = dma.done [#allocation3], 8192
    $region41: #{fully_connected_nn.1} parent=1 // pred_fallthru
      _
    // Predicated region
    $region42: #{fully_connected_nn.1} parent=1 // pred_check
      _
    $region43: #{fully_connected_nn.1} parent=1 // pred_check_branch
      %68 = sbr.rel (0) target = $region45
    $region44: #{fully_connected_nn.1} parent=1 // pred_region
      %69 = dma.done [#allocation5], 8192
    $region45: #{fully_connected_nn.1} parent=1 // pred_fallthru
      _
    // Predicated region
    $region46: #{fully_connected_nn.1} parent=1 // pred_check
      _
    $region47: #{fully_connected_nn.1} parent=1 // pred_check_branch
      %71 = sbr.rel (0) target = $region49
    $region48: #{fully_connected_nn.1} parent=1 // pred_region
      %72 = dma.done [#allocation5], 2048
    $region49: #{fully_connected_nn.1} parent=1 // pred_fallthru
      _
    %v74 = vld [vmem:[%s2] sm:$0xf]
    %v75 = vld [vmem:[%s4] sm:$0x3]
    %v76 = vld [vmem:[%s6] sm:$0x1]
    %v77 = vld [vmem:[%s8] sm:$0x1]
    %v78 = vld [vmem:[%s0] sm:$0xff]
    %v79 = vld [vmem:[%s0 + $0x8] sm:$0xff]
    %v80 = vld [vmem:[%s0 + $0x10] sm:$0xff]
    %v81 = vld [vmem:[%s0 + $0x18] sm:$0xff]
    %v82 = vpack.c.bf16 %v80, %v78
    %v83 = vpack.c.bf16 %v81, %v79
    %v84 = vld [vmem:[#allocation2] sm:$0xff]
    %v85 = vld [vmem:[#allocation2 + $0x8] sm:$0xff]
    %v86 = vld [vmem:[#allocation2 + $0x10] sm:$0xff]
    %v87 = vld [vmem:[#allocation2 + $0x18] sm:$0xff]
    %v88 = vld [vmem:[#allocation2 + $0x20] sm:$0xff]
    %v89 = vld [vmem:[#allocation2 + $0x28] sm:$0xff]
    %v90 = vld [vmem:[#allocation2 + $0x30] sm:$0xff]
    %v91 = vld [vmem:[#allocation2 + $0x38] sm:$0xff]
    %v92 = vld [vmem:[#allocation2 + $0x40] sm:$0xff]
    %v93 = vld [vmem:[#allocation2 + $0x48] sm:$0xff]
    %v94 = vld [vmem:[#allocation2 + $0x50] sm:$0xff]
    %v95 = vld [vmem:[#allocation2 + $0x58] sm:$0xff]
    %v96 = vld [vmem:[#allocation2 + $0x60] sm:$0xff]
    %v97 = vld [vmem:[#allocation2 + $0x68] sm:$0xff]
    %v98 = vld [vmem:[#allocation2 + $0x70] sm:$0xff]
    %v99 = vld [vmem:[#allocation2 + $0x78] sm:$0xff]
    %v100 = vld [vmem:[#allocation2 + $0x80] sm:$0xff]
    %v101 = vld [vmem:[#allocation2 + $0x88] sm:$0xff]
    %v102 = vld [vmem:[#allocation2 + $0x90] sm:$0xff]
    %v103 = vld [vmem:[#allocation2 + $0x98] sm:$0xff]
    %v104 = vld [vmem:[#allocation2 + $0xa0] sm:$0xff]
    %v105 = vld [vmem:[#allocation2 + $0xa8] sm:$0xff]
    %v106 = vld [vmem:[#allocation2 + $0xb0] sm:$0xff]
    %v107 = vld [vmem:[#allocation2 + $0xb8] sm:$0xff]
    %v108 = vld [vmem:[#allocation2 + $0xc0] sm:$0xff]
    %v109 = vld [vmem:[#allocation2 + $0xc8] sm:$0xff]
    %v110 = vld [vmem:[#allocation2 + $0xd0] sm:$0xff]
    %v111 = vld [vmem:[#allocation2 + $0xd8] sm:$0xff]
    %v112 = vld [vmem:[#allocation2 + $0xe0] sm:$0xff]
    %v113 = vld [vmem:[#allocation2 + $0xe8] sm:$0xff]
    %v114 = vld [vmem:[#allocation2 + $0xf0] sm:$0xff]
    %v115 = vld [vmem:[#allocation2 + $0xf8] sm:$0xff]
    %v116 = vld [vmem:[#allocation2 + $0x100] sm:$0xff]
    %v117 = vld [vmem:[#allocation2 + $0x108] sm:$0xff]
    %v118 = vld [vmem:[#allocation2 + $0x110] sm:$0xff]
    %v119 = vld [vmem:[#allocation2 + $0x118] sm:$0xff]
    %v120 = vld [vmem:[#allocation2 + $0x120] sm:$0xff]
    %v121 = vld [vmem:[#allocation2 + $0x128] sm:$0xff]
    %v122 = vld [vmem:[#allocation2 + $0x130] sm:$0xff]
    %v123 = vld [vmem:[#allocation2 + $0x138] sm:$0xff]
    %v124 = vld [vmem:[#allocation2 + $0x140] sm:$0xff]
    %v125 = vld [vmem:[#allocation2 + $0x148] sm:$0xff]
    %v126 = vld [vmem:[#allocation2 + $0x150] sm:$0xff]
    %v127 = vld [vmem:[#allocation2 + $0x158] sm:$0xff]
    %v128 = vld [vmem:[#allocation2 + $0x160] sm:$0xff]
    %v129 = vld [vmem:[#allocation2 + $0x168] sm:$0xff]
    %v130 = vld [vmem:[#allocation2 + $0x170] sm:$0xff]
    %v131 = vld [vmem:[#allocation2 + $0x178] sm:$0xff]
    %v132 = vld [vmem:[#allocation2 + $0x180] sm:$0xff]
    %v133 = vld [vmem:[#allocation2 + $0x188] sm:$0xff]
    %v134 = vld [vmem:[#allocation2 + $0x190] sm:$0xff]
    %v135 = vld [vmem:[#allocation2 + $0x198] sm:$0xff]
    %v136 = vld [vmem:[#allocation2 + $0x1a0] sm:$0xff]
    %v137 = vld [vmem:[#allocation2 + $0x1a8] sm:$0xff]
    %v138 = vld [vmem:[#allocation2 + $0x1b0] sm:$0xff]
    %v139 = vld [vmem:[#allocation2 + $0x1b8] sm:$0xff]
    %v140 = vld [vmem:[#allocation2 + $0x1c0] sm:$0xff]
    %v141 = vld [vmem:[#allocation2 + $0x1c8] sm:$0xff]
    %v142 = vld [vmem:[#allocation2 + $0x1d0] sm:$0xff]
    %v143 = vld [vmem:[#allocation2 + $0x1d8] sm:$0xff]
    %v144 = vld [vmem:[#allocation2 + $0x1e0] sm:$0xff]
    %v145 = vld [vmem:[#allocation2 + $0x1e8] sm:$0xff]
    %v146 = vld [vmem:[#allocation2 + $0x1f0] sm:$0xff]
    %v147 = vld [vmem:[#allocation2 + $0x1f8] sm:$0xff]
    %v149 = vlaneseq
    %v150 = vshrl.u32 %v149, 7
    %v151 = vsub.s32 0, %v150
    %v152 = vrot.slane %v74, %v151
    %v153 = vlaneseq
    %v154 = vshrl.u32 %v153, 7
    %v155 = vsub.s32 1, %v154
    %v156 = vrot.slane %v74, %v155
    %v157 = vlaneseq
    %v158 = vshrl.u32 %v157, 7
    %v159 = vsub.s32 2, %v158
    %v160 = vrot.slane %v74, %v159
    %v161 = vlaneseq
    %v162 = vshrl.u32 %v161, 7
    %v163 = vsub.s32 3, %v162
    %v164 = vrot.slane %v74, %v163
    %v233 = vunpack.c.l.b16 %v84
    %v234 = vunpack.c.h.b16 %v84
    %v235 = vunpack.c.l.b16 %v85
    %v236 = vunpack.c.h.b16 %v85
    %v237 = vunpack.c.l.b16 %v86
    %v238 = vunpack.c.h.b16 %v86
    %v239 = vunpack.c.l.b16 %v87
    %v240 = vunpack.c.h.b16 %v87
    %v241 = vunpack.c.l.b16 %v88
    %v242 = vunpack.c.h.b16 %v88
    %v243 = vunpack.c.l.b16 %v89
    %v244 = vunpack.c.h.b16 %v89
    %v245 = vunpack.c.l.b16 %v90
    %v246 = vunpack.c.h.b16 %v90
    %v247 = vunpack.c.l.b16 %v91
    %v248 = vunpack.c.h.b16 %v91
    %v249 = vunpack.c.l.b16 %v92
    %v250 = vunpack.c.h.b16 %v92
    %v251 = vunpack.c.l.b16 %v93
    %v252 = vunpack.c.h.b16 %v93
    %v253 = vunpack.c.l.b16 %v94
    %v254 = vunpack.c.h.b16 %v94
    %v255 = vunpack.c.l.b16 %v95
    %v256 = vunpack.c.h.b16 %v95
    %v257 = vunpack.c.l.b16 %v96
    %v258 = vunpack.c.h.b16 %v96
    %v259 = vunpack.c.l.b16 %v97
    %v260 = vunpack.c.h.b16 %v97
    %v261 = vunpack.c.l.b16 %v98
    %v262 = vunpack.c.h.b16 %v98
    %v263 = vunpack.c.l.b16 %v99
    %v264 = vunpack.c.h.b16 %v99
    %v265 = vunpack.c.l.b16 %v100
    %v266 = vunpack.c.h.b16 %v100
    %v267 = vunpack.c.l.b16 %v101
    %v268 = vunpack.c.h.b16 %v101
    %v269 = vunpack.c.l.b16 %v102
    %v270 = vunpack.c.h.b16 %v102
    %v271 = vunpack.c.l.b16 %v103
    %v272 = vunpack.c.h.b16 %v103
    %v273 = vunpack.c.l.b16 %v104
    %v274 = vunpack.c.h.b16 %v104
    %v275 = vunpack.c.l.b16 %v105
    %v276 = vunpack.c.h.b16 %v105
    %v277 = vunpack.c.l.b16 %v106
    %v278 = vunpack.c.h.b16 %v106
    %v279 = vunpack.c.l.b16 %v107
    %v280 = vunpack.c.h.b16 %v107
    %v281 = vunpack.c.l.b16 %v108
    %v282 = vunpack.c.h.b16 %v108
    %v283 = vunpack.c.l.b16 %v109
    %v284 = vunpack.c.h.b16 %v109
    %v285 = vunpack.c.l.b16 %v110
    %v286 = vunpack.c.h.b16 %v110
    %v287 = vunpack.c.l.b16 %v111
    %v288 = vunpack.c.h.b16 %v111
    %v289 = vunpack.c.l.b16 %v112
    %v290 = vunpack.c.h.b16 %v112
    %v291 = vunpack.c.l.b16 %v113
    %v292 = vunpack.c.h.b16 %v113
    %v293 = vunpack.c.l.b16 %v114
    %v294 = vunpack.c.h.b16 %v114
    %v295 = vunpack.c.l.b16 %v115
    %v296 = vunpack.c.h.b16 %v115
    %v297 = vunpack.c.l.b16 %v116
    %v298 = vunpack.c.h.b16 %v116
    %v299 = vunpack.c.l.b16 %v117
    %v300 = vunpack.c.h.b16 %v117
    %v301 = vunpack.c.l.b16 %v118
    %v302 = vunpack.c.h.b16 %v118
    %v303 = vunpack.c.l.b16 %v119
    %v304 = vunpack.c.h.b16 %v119
    %v305 = vunpack.c.l.b16 %v120
    %v306 = vunpack.c.h.b16 %v120
    %v307 = vunpack.c.l.b16 %v121
    %v308 = vunpack.c.h.b16 %v121
    %v309 = vunpack.c.l.b16 %v122
    %v310 = vunpack.c.h.b16 %v122
    %v311 = vunpack.c.l.b16 %v123
    %v312 = vunpack.c.h.b16 %v123
    %v313 = vunpack.c.l.b16 %v124
    %v314 = vunpack.c.h.b16 %v124
    %v315 = vunpack.c.l.b16 %v125
    %v316 = vunpack.c.h.b16 %v125
    %v317 = vunpack.c.l.b16 %v126
    %v318 = vunpack.c.h.b16 %v126
    %v319 = vunpack.c.l.b16 %v127
    %v320 = vunpack.c.h.b16 %v127
    %v321 = vunpack.c.l.b16 %v128
    %v322 = vunpack.c.h.b16 %v128
    %v323 = vunpack.c.l.b16 %v129
    %v324 = vunpack.c.h.b16 %v129
    %v325 = vunpack.c.l.b16 %v130
    %v326 = vunpack.c.h.b16 %v130
    %v327 = vunpack.c.l.b16 %v131
    %v328 = vunpack.c.h.b16 %v131
    %v329 = vunpack.c.l.b16 %v132
    %v330 = vunpack.c.h.b16 %v132
    %v331 = vunpack.c.l.b16 %v133
    %v332 = vunpack.c.h.b16 %v133
    %v333 = vunpack.c.l.b16 %v134
    %v334 = vunpack.c.h.b16 %v134
    %v335 = vunpack.c.l.b16 %v135
    %v336 = vunpack.c.h.b16 %v135
    %v337 = vunpack.c.l.b16 %v136
    %v338 = vunpack.c.h.b16 %v136
    %v339 = vunpack.c.l.b16 %v137
    %v340 = vunpack.c.h.b16 %v137
    %v341 = vunpack.c.l.b16 %v138
    %v342 = vunpack.c.h.b16 %v138
    %v343 = vunpack.c.l.b16 %v139
    %v344 = vunpack.c.h.b16 %v139
    %v345 = vunpack.c.l.b16 %v140
    %v346 = vunpack.c.h.b16 %v140
    %v347 = vunpack.c.l.b16 %v141
    %v348 = vunpack.c.h.b16 %v141
    %v349 = vunpack.c.l.b16 %v142
    %v350 = vunpack.c.h.b16 %v142
    %v351 = vunpack.c.l.b16 %v143
    %v352 = vunpack.c.h.b16 %v143
    %v353 = vunpack.c.l.b16 %v144
    %v354 = vunpack.c.h.b16 %v144
    %v355 = vunpack.c.l.b16 %v145
    %v356 = vunpack.c.h.b16 %v145
    %v357 = vunpack.c.l.b16 %v146
    %v358 = vunpack.c.h.b16 %v146
    %v359 = vunpack.c.l.b16 %v147
    %v360 = vunpack.c.h.b16 %v147
    %v361 = vpack.c.b16 %v237, %v233
    %v362 = vpack.c.b16 %v238, %v234
    %v363 = vpack.c.b16 %v239, %v235
    %v364 = vpack.c.b16 %v240, %v236
    %v365 = vpack.c.b16 %v245, %v241
    %v366 = vpack.c.b16 %v246, %v242
    %v367 = vpack.c.b16 %v247, %v243
    %v368 = vpack.c.b16 %v248, %v244
    %v369 = vpack.c.b16 %v253, %v249
    %v370 = vpack.c.b16 %v254, %v250
    %v371 = vpack.c.b16 %v255, %v251
    %v372 = vpack.c.b16 %v256, %v252
    %v373 = vpack.c.b16 %v261, %v257
    %v374 = vpack.c.b16 %v262, %v258
    %v375 = vpack.c.b16 %v263, %v259
    %v376 = vpack.c.b16 %v264, %v260
    %v377 = vpack.c.b16 %v269, %v265
    %v378 = vpack.c.b16 %v270, %v266
    %v379 = vpack.c.b16 %v271, %v267
    %v380 = vpack.c.b16 %v272, %v268
    %v381 = vpack.c.b16 %v277, %v273
    %v382 = vpack.c.b16 %v278, %v274
    %v383 = vpack.c.b16 %v279, %v275
    %v384 = vpack.c.b16 %v280, %v276
    %v385 = vpack.c.b16 %v285, %v281
    %v386 = vpack.c.b16 %v286, %v282
    %v387 = vpack.c.b16 %v287, %v283
    %v388 = vpack.c.b16 %v288, %v284
    %v389 = vpack.c.b16 %v293, %v289
    %v390 = vpack.c.b16 %v294, %v290
    %v391 = vpack.c.b16 %v295, %v291
    %v392 = vpack.c.b16 %v296, %v292
    %v393 = vpack.c.b16 %v301, %v297
    %v394 = vpack.c.b16 %v302, %v298
    %v395 = vpack.c.b16 %v303, %v299
    %v396 = vpack.c.b16 %v304, %v300
    %v397 = vpack.c.b16 %v309, %v305
    %v398 = vpack.c.b16 %v310, %v306
    %v399 = vpack.c.b16 %v311, %v307
    %v400 = vpack.c.b16 %v312, %v308
    %v401 = vpack.c.b16 %v317, %v313
    %v402 = vpack.c.b16 %v318, %v314
    %v403 = vpack.c.b16 %v319, %v315
    %v404 = vpack.c.b16 %v320, %v316
    %v405 = vpack.c.b16 %v325, %v321
    %v406 = vpack.c.b16 %v326, %v322
    %v407 = vpack.c.b16 %v327, %v323
    %v408 = vpack.c.b16 %v328, %v324
    %v409 = vpack.c.b16 %v333, %v329
    %v410 = vpack.c.b16 %v334, %v330
    %v411 = vpack.c.b16 %v335, %v331
    %v412 = vpack.c.b16 %v336, %v332
    %v413 = vpack.c.b16 %v341, %v337
    %v414 = vpack.c.b16 %v342, %v338
    %v415 = vpack.c.b16 %v343, %v339
    %v416 = vpack.c.b16 %v344, %v340
    %v417 = vpack.c.b16 %v349, %v345
    %v418 = vpack.c.b16 %v350, %v346
    %v419 = vpack.c.b16 %v351, %v347
    %v420 = vpack.c.b16 %v352, %v348
    %v421 = vpack.c.b16 %v357, %v353
    %v422 = vpack.c.b16 %v358, %v354
    %v423 = vpack.c.b16 %v359, %v355
    %v424 = vpack.c.b16 %v360, %v356
    %489 = vmatprep.subr.bf16.mxu0 %v390
    %490 = vmatpush1.bf16.msra.mxu0 %v389
    %491 = vmatprep.subr.bf16.mxu0 %v386
    %492 = vmatpush1.bf16.msra.mxu0 %v385
    %493 = vmatprep.subr.bf16.mxu0 %v382
    %494 = vmatpush1.bf16.msra.mxu0 %v381
    %495 = vmatprep.subr.bf16.mxu0 %v378
    %496 = vmatpush1.bf16.msra.mxu0 %v377
    %497 = vmatprep.subr.bf16.mxu0 %v374
    %498 = vmatpush1.bf16.msra.mxu0 %v373
    %499 = vmatprep.subr.bf16.mxu0 %v370
    %500 = vmatpush1.bf16.msra.mxu0 %v369
    %501 = vmatprep.subr.bf16.mxu0 %v366
    %502 = vmatpush1.bf16.msra.mxu0 %v365
    %503 = vmatprep.subr.bf16.mxu0 %v362
    %504 = vmatpush1.bf16.msra.mxu0 %v361
    %505 = vmatprep.subr.bf16.mxu0 %v422
    %506 = vmatpush2.bf16.msra.mxu0 %v421
    %507 = vmatprep.subr.bf16.mxu0 %v418
    %508 = vmatpush2.bf16.msra.mxu0 %v417
    %509 = vmatprep.subr.bf16.mxu0 %v414
    %510 = vmatpush2.bf16.msra.mxu0 %v413
    %511 = vmatprep.subr.bf16.mxu0 %v410
    %512 = vmatpush2.bf16.msra.mxu0 %v409
    %513 = vmatprep.subr.bf16.mxu0 %v406
    %514 = vmatpush2.bf16.msra.mxu0 %v405
    %515 = vmatprep.subr.bf16.mxu0 %v402
    %516 = vmatpush2.bf16.msra.mxu0 %v401
    %517 = vmatprep.subr.bf16.mxu0 %v398
    %518 = vmatpush2.bf16.msra.mxu0 %v397
    %519 = vmatprep.subr.bf16.mxu0 %v394
    %520 = vmatpush2.bf16.msra.mxu0 %v393
    %521 = vmatprep.mubr.bf16.mxu0 %v83
    %522 = vmatmul.mubr.bf16.gmra.mxu0 %v82
    %v523 = vpop.f32.mrf.mxu0
    %v524 = vadd.f32 %v152, %v523
    %v525 = vpop.f32.mrf.mxu0
    %v526 = vadd.f32 %v156, %v525
    %v527 = vpop.f32.mrf.mxu0
    %v528 = vadd.f32 %v152, %v527
    %v529 = vpop.f32.mrf.mxu0
    %v530 = vadd.f32 %v156, %v529
    %531 = vdwg.mxu0
    %532 = vmatprep.subr.bf16.mxu0 %v392
    %533 = vmatpush1.bf16.msra.mxu0 %v391
    %534 = vmatprep.subr.bf16.mxu0 %v388
    %535 = vmatpush1.bf16.msra.mxu0 %v387
    %536 = vmatprep.subr.bf16.mxu0 %v384
    %537 = vmatpush1.bf16.msra.mxu0 %v383
    %538 = vmatprep.subr.bf16.mxu0 %v380
    %539 = vmatpush1.bf16.msra.mxu0 %v379
    %540 = vmatprep.subr.bf16.mxu0 %v376
    %541 = vmatpush1.bf16.msra.mxu0 %v375
    %542 = vmatprep.subr.bf16.mxu0 %v372
    %543 = vmatpush1.bf16.msra.mxu0 %v371
    %544 = vmatprep.subr.bf16.mxu0 %v368
    %545 = vmatpush1.bf16.msra.mxu0 %v367
    %546 = vmatprep.subr.bf16.mxu0 %v364
    %547 = vmatpush1.bf16.msra.mxu0 %v363
    %548 = vmatprep.subr.bf16.mxu0 %v424
    %549 = vmatpush2.bf16.msra.mxu0 %v423
    %550 = vmatprep.subr.bf16.mxu0 %v420
    %551 = vmatpush2.bf16.msra.mxu0 %v419
    %552 = vmatprep.subr.bf16.mxu0 %v416
    %553 = vmatpush2.bf16.msra.mxu0 %v415
    %554 = vmatprep.subr.bf16.mxu0 %v412
    %555 = vmatpush2.bf16.msra.mxu0 %v411
    %556 = vmatprep.subr.bf16.mxu0 %v408
    %557 = vmatpush2.bf16.msra.mxu0 %v407
    %558 = vmatprep.subr.bf16.mxu0 %v404
    %559 = vmatpush2.bf16.msra.mxu0 %v403
    %560 = vmatprep.subr.bf16.mxu0 %v400
    %561 = vmatpush2.bf16.msra.mxu0 %v399
    %562 = vmatprep.subr.bf16.mxu0 %v396
    %563 = vmatpush2.bf16.msra.mxu0 %v395
    %564 = vmatprep.mubr.bf16.mxu0 %v83
    %565 = vmatmul.mubr.bf16.gmra.mxu0 %v82
    %v566 = vpop.f32.mrf.mxu0
    %v567 = vadd.f32 %v160, %v566
    %v568 = vpop.f32.mrf.mxu0
    %v569 = vadd.f32 %v164, %v568
    %v570 = vpop.f32.mrf.mxu0
    %v571 = vadd.f32 %v160, %v570
    %v572 = vpop.f32.mrf.mxu0
    %v573 = vadd.f32 %v164, %v572
    %574 = vdwg.mxu0
    %v575 = vpack.c.bf16 %v528, %v524
    %v576 = vpack.c.bf16 %v530, %v526
    %v577 = vpack.c.bf16 %v571, %v567
    %v578 = vpack.c.bf16 %v573, %v569
    %v579 = vmax.bf16 %v575, 0
    %v580 = vmax.bf16 %v576, 0
    %v581 = vmax.bf16 %v577, 0
    %v582 = vmax.bf16 %v578, 0
    %v583 = vld [vmem:[#allocation4] sm:$0xff]
    %v584 = vld [vmem:[#allocation4 + $0x8] sm:$0xff]
    %v585 = vld [vmem:[#allocation4 + $0x10] sm:$0xff]
    %v586 = vld [vmem:[#allocation4 + $0x18] sm:$0xff]
    %v587 = vld [vmem:[#allocation4 + $0x20] sm:$0xff]
    %v588 = vld [vmem:[#allocation4 + $0x28] sm:$0xff]
    %v589 = vld [vmem:[#allocation4 + $0x30] sm:$0xff]
    %v590 = vld [vmem:[#allocation4 + $0x38] sm:$0xff]
    %v591 = vld [vmem:[#allocation4 + $0x40] sm:$0xff]
    %v592 = vld [vmem:[#allocation4 + $0x48] sm:$0xff]
    %v593 = vld [vmem:[#allocation4 + $0x50] sm:$0xff]
    %v594 = vld [vmem:[#allocation4 + $0x58] sm:$0xff]
    %v595 = vld [vmem:[#allocation4 + $0x60] sm:$0xff]
    %v596 = vld [vmem:[#allocation4 + $0x68] sm:$0xff]
    %v597 = vld [vmem:[#allocation4 + $0x70] sm:$0xff]
    %v598 = vld [vmem:[#allocation4 + $0x78] sm:$0xff]
    %v599 = vld [vmem:[#allocation4 + $0x80] sm:$0xff]
    %v600 = vld [vmem:[#allocation4 + $0x88] sm:$0xff]
    %v601 = vld [vmem:[#allocation4 + $0x90] sm:$0xff]
    %v602 = vld [vmem:[#allocation4 + $0x98] sm:$0xff]
    %v603 = vld [vmem:[#allocation4 + $0xa0] sm:$0xff]
    %v604 = vld [vmem:[#allocation4 + $0xa8] sm:$0xff]
    %v605 = vld [vmem:[#allocation4 + $0xb0] sm:$0xff]
    %v606 = vld [vmem:[#allocation4 + $0xb8] sm:$0xff]
    %v607 = vld [vmem:[#allocation4 + $0xc0] sm:$0xff]
    %v608 = vld [vmem:[#allocation4 + $0xc8] sm:$0xff]
    %v609 = vld [vmem:[#allocation4 + $0xd0] sm:$0xff]
    %v610 = vld [vmem:[#allocation4 + $0xd8] sm:$0xff]
    %v611 = vld [vmem:[#allocation4 + $0xe0] sm:$0xff]
    %v612 = vld [vmem:[#allocation4 + $0xe8] sm:$0xff]
    %v613 = vld [vmem:[#allocation4 + $0xf0] sm:$0xff]
    %v614 = vld [vmem:[#allocation4 + $0xf8] sm:$0xff]
    %v615 = vld [vmem:[#allocation4 + $0x100] sm:$0xff]
    %v616 = vld [vmem:[#allocation4 + $0x108] sm:$0xff]
    %v617 = vld [vmem:[#allocation4 + $0x110] sm:$0xff]
    %v618 = vld [vmem:[#allocation4 + $0x118] sm:$0xff]
    %v619 = vld [vmem:[#allocation4 + $0x120] sm:$0xff]
    %v620 = vld [vmem:[#allocation4 + $0x128] sm:$0xff]
    %v621 = vld [vmem:[#allocation4 + $0x130] sm:$0xff]
    %v622 = vld [vmem:[#allocation4 + $0x138] sm:$0xff]
    %v623 = vld [vmem:[#allocation4 + $0x140] sm:$0xff]
    %v624 = vld [vmem:[#allocation4 + $0x148] sm:$0xff]
    %v625 = vld [vmem:[#allocation4 + $0x150] sm:$0xff]
    %v626 = vld [vmem:[#allocation4 + $0x158] sm:$0xff]
    %v627 = vld [vmem:[#allocation4 + $0x160] sm:$0xff]
    %v628 = vld [vmem:[#allocation4 + $0x168] sm:$0xff]
    %v629 = vld [vmem:[#allocation4 + $0x170] sm:$0xff]
    %v630 = vld [vmem:[#allocation4 + $0x178] sm:$0xff]
    %v631 = vld [vmem:[#allocation4 + $0x180] sm:$0xff]
    %v632 = vld [vmem:[#allocation4 + $0x188] sm:$0xff]
    %v633 = vld [vmem:[#allocation4 + $0x190] sm:$0xff]
    %v634 = vld [vmem:[#allocation4 + $0x198] sm:$0xff]
    %v635 = vld [vmem:[#allocation4 + $0x1a0] sm:$0xff]
    %v636 = vld [vmem:[#allocation4 + $0x1a8] sm:$0xff]
    %v637 = vld [vmem:[#allocation4 + $0x1b0] sm:$0xff]
    %v638 = vld [vmem:[#allocation4 + $0x1b8] sm:$0xff]
    %v639 = vld [vmem:[#allocation4 + $0x1c0] sm:$0xff]
    %v640 = vld [vmem:[#allocation4 + $0x1c8] sm:$0xff]
    %v641 = vld [vmem:[#allocation4 + $0x1d0] sm:$0xff]
    %v642 = vld [vmem:[#allocation4 + $0x1d8] sm:$0xff]
    %v643 = vld [vmem:[#allocation4 + $0x1e0] sm:$0xff]
    %v644 = vld [vmem:[#allocation4 + $0x1e8] sm:$0xff]
    %v645 = vld [vmem:[#allocation4 + $0x1f0] sm:$0xff]
    %v646 = vld [vmem:[#allocation4 + $0x1f8] sm:$0xff]
    %v648 = vlaneseq
    %v649 = vshrl.u32 %v648, 7
    %v650 = vsub.s32 0, %v649
    %v651 = vrot.slane %v75, %v650
    %v652 = vlaneseq
    %v653 = vshrl.u32 %v652, 7
    %v654 = vsub.s32 1, %v653
    %v655 = vrot.slane %v75, %v654
    %v722 = vunpack.c.l.b16 %v583
    %v723 = vunpack.c.h.b16 %v583
    %v724 = vunpack.c.l.b16 %v584
    %v725 = vunpack.c.h.b16 %v584
    %v726 = vunpack.c.l.b16 %v585
    %v727 = vunpack.c.h.b16 %v585
    %v728 = vunpack.c.l.b16 %v586
    %v729 = vunpack.c.h.b16 %v586
    %v730 = vunpack.c.l.b16 %v587
    %v731 = vunpack.c.h.b16 %v587
    %v732 = vunpack.c.l.b16 %v588
    %v733 = vunpack.c.h.b16 %v588
    %v734 = vunpack.c.l.b16 %v589
    %v735 = vunpack.c.h.b16 %v589
    %v736 = vunpack.c.l.b16 %v590
    %v737 = vunpack.c.h.b16 %v590
    %v738 = vunpack.c.l.b16 %v591
    %v739 = vunpack.c.h.b16 %v591
    %v740 = vunpack.c.l.b16 %v592
    %v741 = vunpack.c.h.b16 %v592
    %v742 = vunpack.c.l.b16 %v593
    %v743 = vunpack.c.h.b16 %v593
    %v744 = vunpack.c.l.b16 %v594
    %v745 = vunpack.c.h.b16 %v594
    %v746 = vunpack.c.l.b16 %v595
    %v747 = vunpack.c.h.b16 %v595
    %v748 = vunpack.c.l.b16 %v596
    %v749 = vunpack.c.h.b16 %v596
    %v750 = vunpack.c.l.b16 %v597
    %v751 = vunpack.c.h.b16 %v597
    %v752 = vunpack.c.l.b16 %v598
    %v753 = vunpack.c.h.b16 %v598
    %v754 = vunpack.c.l.b16 %v599
    %v755 = vunpack.c.h.b16 %v599
    %v756 = vunpack.c.l.b16 %v600
    %v757 = vunpack.c.h.b16 %v600
    %v758 = vunpack.c.l.b16 %v601
    %v759 = vunpack.c.h.b16 %v601
    %v760 = vunpack.c.l.b16 %v602
    %v761 = vunpack.c.h.b16 %v602
    %v762 = vunpack.c.l.b16 %v603
    %v763 = vunpack.c.h.b16 %v603
    %v764 = vunpack.c.l.b16 %v604
    %v765 = vunpack.c.h.b16 %v604
    %v766 = vunpack.c.l.b16 %v605
    %v767 = vunpack.c.h.b16 %v605
    %v768 = vunpack.c.l.b16 %v606
    %v769 = vunpack.c.h.b16 %v606
    %v770 = vunpack.c.l.b16 %v607
    %v771 = vunpack.c.h.b16 %v607
    %v772 = vunpack.c.l.b16 %v608
    %v773 = vunpack.c.h.b16 %v608
    %v774 = vunpack.c.l.b16 %v609
    %v775 = vunpack.c.h.b16 %v609
    %v776 = vunpack.c.l.b16 %v610
    %v777 = vunpack.c.h.b16 %v610
    %v778 = vunpack.c.l.b16 %v611
    %v779 = vunpack.c.h.b16 %v611
    %v780 = vunpack.c.l.b16 %v612
    %v781 = vunpack.c.h.b16 %v612
    %v782 = vunpack.c.l.b16 %v613
    %v783 = vunpack.c.h.b16 %v613
    %v784 = vunpack.c.l.b16 %v614
    %v785 = vunpack.c.h.b16 %v614
    %v786 = vunpack.c.l.b16 %v615
    %v787 = vunpack.c.h.b16 %v615
    %v788 = vunpack.c.l.b16 %v616
    %v789 = vunpack.c.h.b16 %v616
    %v790 = vunpack.c.l.b16 %v617
    %v791 = vunpack.c.h.b16 %v617
    %v792 = vunpack.c.l.b16 %v618
    %v793 = vunpack.c.h.b16 %v618
    %v794 = vunpack.c.l.b16 %v619
    %v795 = vunpack.c.h.b16 %v619
    %v796 = vunpack.c.l.b16 %v620
    %v797 = vunpack.c.h.b16 %v620
    %v798 = vunpack.c.l.b16 %v621
    %v799 = vunpack.c.h.b16 %v621
    %v800 = vunpack.c.l.b16 %v622
    %v801 = vunpack.c.h.b16 %v622
    %v802 = vunpack.c.l.b16 %v623
    %v803 = vunpack.c.h.b16 %v623
    %v804 = vunpack.c.l.b16 %v624
    %v805 = vunpack.c.h.b16 %v624
    %v806 = vunpack.c.l.b16 %v625
    %v807 = vunpack.c.h.b16 %v625
    %v808 = vunpack.c.l.b16 %v626
    %v809 = vunpack.c.h.b16 %v626
    %v810 = vunpack.c.l.b16 %v627
    %v811 = vunpack.c.h.b16 %v627
    %v812 = vunpack.c.l.b16 %v628
    %v813 = vunpack.c.h.b16 %v628
    %v814 = vunpack.c.l.b16 %v629
    %v815 = vunpack.c.h.b16 %v629
    %v816 = vunpack.c.l.b16 %v630
    %v817 = vunpack.c.h.b16 %v630
    %v818 = vunpack.c.l.b16 %v631
    %v819 = vunpack.c.h.b16 %v631
    %v820 = vunpack.c.l.b16 %v632
    %v821 = vunpack.c.h.b16 %v632
    %v822 = vunpack.c.l.b16 %v633
    %v823 = vunpack.c.h.b16 %v633
    %v824 = vunpack.c.l.b16 %v634
    %v825 = vunpack.c.h.b16 %v634
    %v826 = vunpack.c.l.b16 %v635
    %v827 = vunpack.c.h.b16 %v635
    %v828 = vunpack.c.l.b16 %v636
    %v829 = vunpack.c.h.b16 %v636
    %v830 = vunpack.c.l.b16 %v637
    %v831 = vunpack.c.h.b16 %v637
    %v832 = vunpack.c.l.b16 %v638
    %v833 = vunpack.c.h.b16 %v638
    %v834 = vunpack.c.l.b16 %v639
    %v835 = vunpack.c.h.b16 %v639
    %v836 = vunpack.c.l.b16 %v640
    %v837 = vunpack.c.h.b16 %v640
    %v838 = vunpack.c.l.b16 %v641
    %v839 = vunpack.c.h.b16 %v641
    %v840 = vunpack.c.l.b16 %v642
    %v841 = vunpack.c.h.b16 %v642
    %v842 = vunpack.c.l.b16 %v643
    %v843 = vunpack.c.h.b16 %v643
    %v844 = vunpack.c.l.b16 %v644
    %v845 = vunpack.c.h.b16 %v644
    %v846 = vunpack.c.l.b16 %v645
    %v847 = vunpack.c.h.b16 %v645
    %v848 = vunpack.c.l.b16 %v646
    %v849 = vunpack.c.h.b16 %v646
    %v850 = vpack.c.b16 %v724, %v722
    %v851 = vpack.c.b16 %v725, %v723
    %v852 = vpack.c.b16 %v728, %v726
    %v853 = vpack.c.b16 %v729, %v727
    %v854 = vpack.c.b16 %v732, %v730
    %v855 = vpack.c.b16 %v733, %v731
    %v856 = vpack.c.b16 %v736, %v734
    %v857 = vpack.c.b16 %v737, %v735
    %v858 = vpack.c.b16 %v740, %v738
    %v859 = vpack.c.b16 %v741, %v739
    %v860 = vpack.c.b16 %v744, %v742
    %v861 = vpack.c.b16 %v745, %v743
    %v862 = vpack.c.b16 %v748, %v746
    %v863 = vpack.c.b16 %v749, %v747
    %v864 = vpack.c.b16 %v752, %v750
    %v865 = vpack.c.b16 %v753, %v751
    %v866 = vpack.c.b16 %v756, %v754
    %v867 = vpack.c.b16 %v757, %v755
    %v868 = vpack.c.b16 %v760, %v758
    %v869 = vpack.c.b16 %v761, %v759
    %v870 = vpack.c.b16 %v764, %v762
    %v871 = vpack.c.b16 %v765, %v763
    %v872 = vpack.c.b16 %v768, %v766
    %v873 = vpack.c.b16 %v769, %v767
    %v874 = vpack.c.b16 %v772, %v770
    %v875 = vpack.c.b16 %v773, %v771
    %v876 = vpack.c.b16 %v776, %v774
    %v877 = vpack.c.b16 %v777, %v775
    %v878 = vpack.c.b16 %v780, %v778
    %v879 = vpack.c.b16 %v781, %v779
    %v880 = vpack.c.b16 %v784, %v782
    %v881 = vpack.c.b16 %v785, %v783
    %v882 = vpack.c.b16 %v788, %v786
    %v883 = vpack.c.b16 %v789, %v787
    %v884 = vpack.c.b16 %v792, %v790
    %v885 = vpack.c.b16 %v793, %v791
    %v886 = vpack.c.b16 %v796, %v794
    %v887 = vpack.c.b16 %v797, %v795
    %v888 = vpack.c.b16 %v800, %v798
    %v889 = vpack.c.b16 %v801, %v799
    %v890 = vpack.c.b16 %v804, %v802
    %v891 = vpack.c.b16 %v805, %v803
    %v892 = vpack.c.b16 %v808, %v806
    %v893 = vpack.c.b16 %v809, %v807
    %v894 = vpack.c.b16 %v812, %v810
    %v895 = vpack.c.b16 %v813, %v811
    %v896 = vpack.c.b16 %v816, %v814
    %v897 = vpack.c.b16 %v817, %v815
    %v898 = vpack.c.b16 %v820, %v818
    %v899 = vpack.c.b16 %v821, %v819
    %v900 = vpack.c.b16 %v824, %v822
    %v901 = vpack.c.b16 %v825, %v823
    %v902 = vpack.c.b16 %v828, %v826
    %v903 = vpack.c.b16 %v829, %v827
    %v904 = vpack.c.b16 %v832, %v830
    %v905 = vpack.c.b16 %v833, %v831
    %v906 = vpack.c.b16 %v836, %v834
    %v907 = vpack.c.b16 %v837, %v835
    %v908 = vpack.c.b16 %v840, %v838
    %v909 = vpack.c.b16 %v841, %v839
    %v910 = vpack.c.b16 %v844, %v842
    %v911 = vpack.c.b16 %v845, %v843
    %v912 = vpack.c.b16 %v848, %v846
    %v913 = vpack.c.b16 %v849, %v847
    %978 = vmatprep.subr.bf16.mxu0 %v865
    %979 = vmatpush1.bf16.msra.mxu0 %v864
    %980 = vmatprep.subr.bf16.mxu0 %v863
    %981 = vmatpush1.bf16.msra.mxu0 %v862
    %982 = vmatprep.subr.bf16.mxu0 %v861
    %983 = vmatpush1.bf16.msra.mxu0 %v860
    %984 = vmatprep.subr.bf16.mxu0 %v859
    %985 = vmatpush1.bf16.msra.mxu0 %v858
    %986 = vmatprep.subr.bf16.mxu0 %v857
    %987 = vmatpush1.bf16.msra.mxu0 %v856
    %988 = vmatprep.subr.bf16.mxu0 %v855
    %989 = vmatpush1.bf16.msra.mxu0 %v854
    %990 = vmatprep.subr.bf16.mxu0 %v853
    %991 = vmatpush1.bf16.msra.mxu0 %v852
    %992 = vmatprep.subr.bf16.mxu0 %v851
    %993 = vmatpush1.bf16.msra.mxu0 %v850
    %994 = vmatprep.subr.bf16.mxu0 %v881
    %995 = vmatpush2.bf16.msra.mxu0 %v880
    %996 = vmatprep.subr.bf16.mxu0 %v879
    %997 = vmatpush2.bf16.msra.mxu0 %v878
    %998 = vmatprep.subr.bf16.mxu0 %v877
    %999 = vmatpush2.bf16.msra.mxu0 %v876
    %1000 = vmatprep.subr.bf16.mxu0 %v875
    %1001 = vmatpush2.bf16.msra.mxu0 %v874
    %1002 = vmatprep.subr.bf16.mxu0 %v873
    %1003 = vmatpush2.bf16.msra.mxu0 %v872
    %1004 = vmatprep.subr.bf16.mxu0 %v871
    %1005 = vmatpush2.bf16.msra.mxu0 %v870
    %1006 = vmatprep.subr.bf16.mxu0 %v869
    %1007 = vmatpush2.bf16.msra.mxu0 %v868
    %1008 = vmatprep.subr.bf16.mxu0 %v867
    %1009 = vmatpush2.bf16.msra.mxu0 %v866
    %1010 = vmatprep.mubr.bf16.mxu0 %v580
    %1011 = vmatmul.mubr.bf16.gmra.mxu0 %v579
    %v1012 = vpop.f32.mrf.mxu0
    %v1013 = vadd.f32 %v651, %v1012
    %v1014 = vpop.f32.mrf.mxu0
    %v1015 = vadd.f32 %v655, %v1014
    %v1016 = vpop.f32.mrf.mxu0
    %v1017 = vadd.f32 %v651, %v1016
    %v1018 = vpop.f32.mrf.mxu0
    %v1019 = vadd.f32 %v655, %v1018
    %1020 = vdwg.mxu0
    %1021 = vmatprep.subr.bf16.mxu0 %v897
    %1022 = vmatpush1.bf16.msra.mxu0 %v896
    %1023 = vmatprep.subr.bf16.mxu0 %v895
    %1024 = vmatpush1.bf16.msra.mxu0 %v894
    %1025 = vmatprep.subr.bf16.mxu0 %v893
    %1026 = vmatpush1.bf16.msra.mxu0 %v892
    %1027 = vmatprep.subr.bf16.mxu0 %v891
    %1028 = vmatpush1.bf16.msra.mxu0 %v890
    %1029 = vmatprep.subr.bf16.mxu0 %v889
    %1030 = vmatpush1.bf16.msra.mxu0 %v888
    %1031 = vmatprep.subr.bf16.mxu0 %v887
    %1032 = vmatpush1.bf16.msra.mxu0 %v886
    %1033 = vmatprep.subr.bf16.mxu0 %v885
    %1034 = vmatpush1.bf16.msra.mxu0 %v884
    %1035 = vmatprep.subr.bf16.mxu0 %v883
    %1036 = vmatpush1.bf16.msra.mxu0 %v882
    %1037 = vmatprep.subr.bf16.mxu0 %v913
    %1038 = vmatpush2.bf16.msra.mxu0 %v912
    %1039 = vmatprep.subr.bf16.mxu0 %v911
    %1040 = vmatpush2.bf16.msra.mxu0 %v910
    %1041 = vmatprep.subr.bf16.mxu0 %v909
    %1042 = vmatpush2.bf16.msra.mxu0 %v908
    %1043 = vmatprep.subr.bf16.mxu0 %v907
    %1044 = vmatpush2.bf16.msra.mxu0 %v906
    %1045 = vmatprep.subr.bf16.mxu0 %v905
    %1046 = vmatpush2.bf16.msra.mxu0 %v904
    %1047 = vmatprep.subr.bf16.mxu0 %v903
    %1048 = vmatpush2.bf16.msra.mxu0 %v902
    %1049 = vmatprep.subr.bf16.mxu0 %v901
    %1050 = vmatpush2.bf16.msra.mxu0 %v900
    %1051 = vmatprep.subr.bf16.mxu0 %v899
    %1052 = vmatpush2.bf16.msra.mxu0 %v898
    %1053 = vmatprep.mubr.bf16.mxu0 %v582
    %1054 = vmatmul.mubr.bf16.gmra.mxu0 %v581
    %v1055 = vpop.f32.mrf.mxu0
    %v1056 = vadd.f32 %v1013, %v1055
    %v1057 = vpop.f32.mrf.mxu0
    %v1058 = vadd.f32 %v1015, %v1057
    %v1059 = vpop.f32.mrf.mxu0
    %v1060 = vadd.f32 %v1017, %v1059
    %v1061 = vpop.f32.mrf.mxu0
    %v1062 = vadd.f32 %v1019, %v1061
    %1063 = vdwg.mxu0
    %v1064 = vpack.c.bf16 %v1060, %v1056
    %v1065 = vpack.c.bf16 %v1062, %v1058
    %v1066 = vmax.bf16 %v1064, 0
    %v1067 = vmax.bf16 %v1065, 0
    %v1068 = vld [vmem:[#allocation6] sm:$0xf]
    %v1069 = vld [vmem:[#allocation6 + $0x4] sm:$0xf]
    %v1070 = vld [vmem:[#allocation6 + $0x8] sm:$0xf]
    %v1071 = vld [vmem:[#allocation6 + $0xc] sm:$0xf]
    %v1072 = vld [vmem:[#allocation6 + $0x10] sm:$0xf]
    %v1073 = vld [vmem:[#allocation6 + $0x14] sm:$0xf]
    %v1074 = vld [vmem:[#allocation6 + $0x18] sm:$0xf]
    %v1075 = vld [vmem:[#allocation6 + $0x1c] sm:$0xf]
    %v1076 = vld [vmem:[#allocation6 + $0x20] sm:$0xf]
    %v1077 = vld [vmem:[#allocation6 + $0x24] sm:$0xf]
    %v1078 = vld [vmem:[#allocation6 + $0x28] sm:$0xf]
    %v1079 = vld [vmem:[#allocation6 + $0x2c] sm:$0xf]
    %v1080 = vld [vmem:[#allocation6 + $0x30] sm:$0xf]
    %v1081 = vld [vmem:[#allocation6 + $0x34] sm:$0xf]
    %v1082 = vld [vmem:[#allocation6 + $0x38] sm:$0xf]
    %v1083 = vld [vmem:[#allocation6 + $0x3c] sm:$0xf]
    %v1084 = vld [vmem:[#allocation6 + $0x40] sm:$0xf]
    %v1085 = vld [vmem:[#allocation6 + $0x44] sm:$0xf]
    %v1086 = vld [vmem:[#allocation6 + $0x48] sm:$0xf]
    %v1087 = vld [vmem:[#allocation6 + $0x4c] sm:$0xf]
    %v1088 = vld [vmem:[#allocation6 + $0x50] sm:$0xf]
    %v1089 = vld [vmem:[#allocation6 + $0x54] sm:$0xf]
    %v1090 = vld [vmem:[#allocation6 + $0x58] sm:$0xf]
    %v1091 = vld [vmem:[#allocation6 + $0x5c] sm:$0xf]
    %v1092 = vld [vmem:[#allocation6 + $0x60] sm:$0xf]
    %v1093 = vld [vmem:[#allocation6 + $0x64] sm:$0xf]
    %v1094 = vld [vmem:[#allocation6 + $0x68] sm:$0xf]
    %v1095 = vld [vmem:[#allocation6 + $0x6c] sm:$0xf]
    %v1096 = vld [vmem:[#allocation6 + $0x70] sm:$0xf]
    %v1097 = vld [vmem:[#allocation6 + $0x74] sm:$0xf]
    %v1098 = vld [vmem:[#allocation6 + $0x78] sm:$0xf]
    %v1099 = vld [vmem:[#allocation6 + $0x7c] sm:$0xf]
    %v1101 = vlaneseq
    %v1102 = vshrl.u32 %v1101, 7
    %v1103 = vsub.s32 0, %v1102
    %v1104 = vrot.slane %v76, %v1103
    %v1138 = vunpack.c.l.b16 %v1068
    %v1139 = vunpack.c.l.b16 %v1069
    %v1140 = vunpack.c.l.b16 %v1070
    %v1141 = vunpack.c.l.b16 %v1071
    %v1142 = vunpack.c.l.b16 %v1072
    %v1143 = vunpack.c.l.b16 %v1073
    %v1144 = vunpack.c.l.b16 %v1074
    %v1145 = vunpack.c.l.b16 %v1075
    %v1146 = vunpack.c.l.b16 %v1076
    %v1147 = vunpack.c.l.b16 %v1077
    %v1148 = vunpack.c.l.b16 %v1078
    %v1149 = vunpack.c.l.b16 %v1079
    %v1150 = vunpack.c.l.b16 %v1080
    %v1151 = vunpack.c.l.b16 %v1081
    %v1152 = vunpack.c.l.b16 %v1082
    %v1153 = vunpack.c.l.b16 %v1083
    %v1154 = vunpack.c.l.b16 %v1084
    %v1155 = vunpack.c.l.b16 %v1085
    %v1156 = vunpack.c.l.b16 %v1086
    %v1157 = vunpack.c.l.b16 %v1087
    %v1158 = vunpack.c.l.b16 %v1088
    %v1159 = vunpack.c.l.b16 %v1089
    %v1160 = vunpack.c.l.b16 %v1090
    %v1161 = vunpack.c.l.b16 %v1091
    %v1162 = vunpack.c.l.b16 %v1092
    %v1163 = vunpack.c.l.b16 %v1093
    %v1164 = vunpack.c.l.b16 %v1094
    %v1165 = vunpack.c.l.b16 %v1095
    %v1166 = vunpack.c.l.b16 %v1096
    %v1167 = vunpack.c.l.b16 %v1097
    %v1168 = vunpack.c.l.b16 %v1098
    %v1169 = vunpack.c.l.b16 %v1099
    %v1170 = vpack.c.b16 %v1139, %v1138
    %v1171 = vpack.c.b16 %v1141, %v1140
    %v1172 = vpack.c.b16 %v1143, %v1142
    %v1173 = vpack.c.b16 %v1145, %v1144
    %v1174 = vpack.c.b16 %v1147, %v1146
    %v1175 = vpack.c.b16 %v1149, %v1148
    %v1176 = vpack.c.b16 %v1151, %v1150
    %v1177 = vpack.c.b16 %v1153, %v1152
    %v1178 = vpack.c.b16 %v1155, %v1154
    %v1179 = vpack.c.b16 %v1157, %v1156
    %v1180 = vpack.c.b16 %v1159, %v1158
    %v1181 = vpack.c.b16 %v1161, %v1160
    %v1182 = vpack.c.b16 %v1163, %v1162
    %v1183 = vpack.c.b16 %v1165, %v1164
    %v1184 = vpack.c.b16 %v1167, %v1166
    %v1185 = vpack.c.b16 %v1169, %v1168
    %1202 = vmatprep.subr.bf16.mxu0 0
    %1203 = vmatpush1.bf16.msra.mxu0 %v1177
    %1204 = vmatprep.subr.bf16.mxu0 0
    %1205 = vmatpush1.bf16.msra.mxu0 %v1176
    %1206 = vmatprep.subr.bf16.mxu0 0
    %1207 = vmatpush1.bf16.msra.mxu0 %v1175
    %1208 = vmatprep.subr.bf16.mxu0 0
    %1209 = vmatpush1.bf16.msra.mxu0 %v1174
    %1210 = vmatprep.subr.bf16.mxu0 0
    %1211 = vmatpush1.bf16.msra.mxu0 %v1173
    %1212 = vmatprep.subr.bf16.mxu0 0
    %1213 = vmatpush1.bf16.msra.mxu0 %v1172
    %1214 = vmatprep.subr.bf16.mxu0 0
    %1215 = vmatpush1.bf16.msra.mxu0 %v1171
    %1216 = vmatprep.subr.bf16.mxu0 0
    %1217 = vmatpush1.bf16.msra.mxu0 %v1170
    %1218 = vmatprep.subr.bf16.mxu0 0
    %1219 = vmatpush2.bf16.msra.mxu0 %v1185
    %1220 = vmatprep.subr.bf16.mxu0 0
    %1221 = vmatpush2.bf16.msra.mxu0 %v1184
    %1222 = vmatprep.subr.bf16.mxu0 0
    %1223 = vmatpush2.bf16.msra.mxu0 %v1183
    %1224 = vmatprep.subr.bf16.mxu0 0
    %1225 = vmatpush2.bf16.msra.mxu0 %v1182
    %1226 = vmatprep.subr.bf16.mxu0 0
    %1227 = vmatpush2.bf16.msra.mxu0 %v1181
    %1228 = vmatprep.subr.bf16.mxu0 0
    %1229 = vmatpush2.bf16.msra.mxu0 %v1180
    %1230 = vmatprep.subr.bf16.mxu0 0
    %1231 = vmatpush2.bf16.msra.mxu0 %v1179
    %1232 = vmatprep.subr.bf16.mxu0 0
    %1233 = vmatpush2.bf16.msra.mxu0 %v1178
    %1234 = vmatprep.mubr.bf16.mxu0 %v1067
    %1235 = vmatmul.mubr.bf16.gmra.mxu0 %v1066
    %v1236 = vpop.f32.mrf.mxu0
    %v1237 = vadd.f32 %v1104, %v1236
    %v1238 = vpop.f32.mrf.mxu0
    %v1239 = vpop.f32.mrf.mxu0
    %v1240 = vadd.f32 %v1104, %v1239
    %v1241 = vpop.f32.mrf.mxu0
    %1242 = vdwg.mxu0
    %v1243 = vpack.c.bf16 %v1240, %v1237
    %v1244 = vmax.bf16 %v1243, 0
    %v1245 = vld [vmem:[%s7] sm:$0xf]
    %v1246 = vld [vmem:[%s7 + $0x4] sm:$0xf]
    %v1247 = vld [vmem:[%s7 + $0x8] sm:$0xf]
    %v1248 = vld [vmem:[%s7 + $0xc] sm:$0xf]
    %v1249 = vld [vmem:[%s7 + $0x10] sm:$0xf]
    %v1250 = vld [vmem:[%s7 + $0x14] sm:$0xf]
    %v1251 = vld [vmem:[%s7 + $0x18] sm:$0xf]
    %v1252 = vld [vmem:[%s7 + $0x1c] sm:$0xf]
    %v1253 = vld [vmem:[%s7 + $0x20] sm:$0xf]
    %v1254 = vld [vmem:[%s7 + $0x24] sm:$0xf]
    %v1255 = vld [vmem:[%s7 + $0x28] sm:$0xf]
    %v1256 = vld [vmem:[%s7 + $0x2c] sm:$0xf]
    %v1257 = vld [vmem:[%s7 + $0x30] sm:$0xf]
    %v1258 = vld [vmem:[%s7 + $0x34] sm:$0xf]
    %v1259 = vld [vmem:[%s7 + $0x38] sm:$0xf]
    %v1260 = vld [vmem:[%s7 + $0x3c] sm:$0xf]
    %v1262 = vlaneseq
    %v1263 = vshrl.u32 %v1262, 7
    %v1264 = vsub.s32 0, %v1263
    %v1265 = vrot.slane %v77, %v1264
    %v1283 = vunpack.c.l.b16 %v1245
    %v1284 = vunpack.c.l.b16 %v1246
    %v1285 = vunpack.c.l.b16 %v1247
    %v1286 = vunpack.c.l.b16 %v1248
    %v1287 = vunpack.c.l.b16 %v1249
    %v1288 = vunpack.c.l.b16 %v1250
    %v1289 = vunpack.c.l.b16 %v1251
    %v1290 = vunpack.c.l.b16 %v1252
    %v1291 = vunpack.c.l.b16 %v1253
    %v1292 = vunpack.c.l.b16 %v1254
    %v1293 = vunpack.c.l.b16 %v1255
    %v1294 = vunpack.c.l.b16 %v1256
    %v1295 = vunpack.c.l.b16 %v1257
    %v1296 = vunpack.c.l.b16 %v1258
    %v1297 = vunpack.c.l.b16 %v1259
    %v1298 = vunpack.c.l.b16 %v1260
    %v1299 = vpack.c.b16 %v1284, %v1283
    %v1300 = vpack.c.b16 %v1286, %v1285
    %v1301 = vpack.c.b16 %v1288, %v1287
    %v1302 = vpack.c.b16 %v1290, %v1289
    %v1303 = vpack.c.b16 %v1292, %v1291
    %v1304 = vpack.c.b16 %v1294, %v1293
    %v1305 = vpack.c.b16 %v1296, %v1295
    %v1306 = vpack.c.b16 %v1298, %v1297
    %1315 = vmatprep.subr.bf16.mxu0 0
    %1316 = vmatpush1.bf16.msra.mxu0 %v1306
    %1317 = vmatprep.subr.bf16.mxu0 0
    %1318 = vmatpush1.bf16.msra.mxu0 %v1305
    %1319 = vmatprep.subr.bf16.mxu0 0
    %1320 = vmatpush1.bf16.msra.mxu0 %v1304
    %1321 = vmatprep.subr.bf16.mxu0 0
    %1322 = vmatpush1.bf16.msra.mxu0 %v1303
    %1323 = vmatprep.subr.bf16.mxu0 0
    %1324 = vmatpush1.bf16.msra.mxu0 %v1302
    %1325 = vmatprep.subr.bf16.mxu0 0
    %1326 = vmatpush1.bf16.msra.mxu0 %v1301
    %1327 = vmatprep.subr.bf16.mxu0 0
    %1328 = vmatpush1.bf16.msra.mxu0 %v1300
    %1329 = vmatprep.subr.bf16.mxu0 0
    %1330 = vmatpush1.bf16.msra.mxu0 %v1299
    %1331 = vmatprep.subr.bf16.mxu0 0
    %1332 = vmatpush2.bf16.msra.mxu0 0
    %1333 = vmatprep.subr.bf16.mxu0 0
    %1334 = vmatpush2.bf16.msra.mxu0 0
    %1335 = vmatprep.subr.bf16.mxu0 0
    %1336 = vmatpush2.bf16.msra.mxu0 0
    %1337 = vmatprep.subr.bf16.mxu0 0
    %1338 = vmatpush2.bf16.msra.mxu0 0
    %1339 = vmatprep.subr.bf16.mxu0 0
    %1340 = vmatpush2.bf16.msra.mxu0 0
    %1341 = vmatprep.subr.bf16.mxu0 0
    %1342 = vmatpush2.bf16.msra.mxu0 0
    %1343 = vmatprep.subr.bf16.mxu0 0
    %1344 = vmatpush2.bf16.msra.mxu0 0
    %1345 = vmatprep.subr.bf16.mxu0 0
    %1346 = vmatpush2.bf16.msra.mxu0 0
    %1347 = vmatprep.mubr.bf16.mxu0 0
    %1348 = vmatmul.mubr.bf16.gmra.mxu0 %v1244
    %v1349 = vpop.f32.mrf.mxu0
    %v1350 = vadd.f32 %v1265, %v1349
    %v1351 = vpop.f32.mrf.mxu0
    %v1352 = vpop.f32.mrf.mxu0
    %v1353 = vadd.f32 %v1265, %v1352
    %v1354 = vpop.f32.mrf.mxu0
    %1355 = vdwg.mxu0
    %v1356 = vpack.c.bf16 %v1353, %v1350
    %v1358 = vunpack.c.l.b16 %v1356
    %v1359 = vunpack.c.h.b16 %v1356
    %v1360 = vpack.c.b16 %v1358, %v1358
    %v1361 = vpack.c.b16 %v1359, %v1359
    %1364 = vst [vmem:[%s9] sm:$0xf] %v1360
    %1365 = vst [vmem:[%s9 + $0x4] sm:$0xf] %v1361
    // Predicated region
    $region50: #{fully_connected_nn.1} parent=1 // pred_check
      _
    $region51: #{fully_connected_nn.1} parent=1 // pred_check_branch
      %1367 = sbr.rel (0) target = $region53
    $region52: #{fully_connected_nn.1} parent=1 // pred_region
      _
    $region53: #{fully_connected_nn.1} parent=1 // pred_fallthru
      _
    // Predicated region
    $region54: #{fully_connected_nn.1} parent=1 // pred_check
      _
    $region55: #{fully_connected_nn.1} parent=1 // pred_check_branch
      %1369 = sbr.rel (0) target = $region57
    $region56: #{fully_connected_nn.1} parent=1 // pred_region
      _
    $region57: #{fully_connected_nn.1} parent=1 // pred_fallthru
      _
    %1370 = vsyncpa [#allocation3], 1
    %1371 = vsyncpa [#allocation5], 1

</llo_original>
